<compile_context>
chip_gen: v5e
topology: v5e:2x2
jax: 0.10.0
libtpu: 0.0.40
codegen_flags: <defaults>
</compile_context>

<pallas_src>
import jax
import jax.numpy as jnp
from jax import lax
from jax.experimental import pallas as pl
from jax.experimental.pallas import tpu as pltpu


def _conv_bn_prelu_kernel(x_ref, w_ref, p_ref, o_ref):
    # x_ref: (bn, Cin, thw)   activation tile, spatial on lanes
    # w_ref: (Cout, Cin)      conv weight with BN scale folded in (resident)
    # p_ref: (2, Cout, 1)     [0] = BN shift, [1] = PReLU slope (resident)
    # o_ref: (bn, Cout, thw)  output tile, spatial on lanes (lane-dense stores)
    bn, cin, _ = x_ref.shape
    w = w_ref[...].astype(jnp.float32)       # (Cout, Cin)
    shift = p_ref[0]                          # (Cout, 1)
    alpha = p_ref[1]                          # (Cout, 1)
    use_vpu = cin <= 8                        # tiny contraction: VPU FMA beats degenerate MXU use

    for b in range(bn):                       # bn is a small static constant -> unrolled
        x2 = x_ref[b]                         # (Cin, thw)
        if use_vpu:
            y = w[:, 0:1] * x2[0:1, :]        # (Cout,1) * (1,thw) -> (Cout, thw)
            for c in range(1, cin):
                y = y + w[:, c:c + 1] * x2[c:c + 1, :]
        else:
            y = lax.dot_general(w, x2, (((1,), (0,)), ((), ())),
                                preferred_element_type=jnp.float32)
        y = y + shift
        o_ref[b] = jnp.where(y > 0, y, alpha * y).astype(o_ref.dtype)


def conv_prelu(x_nchw, weight, gamma, beta, running_mean, running_var, alpha,
               *, eps=1e-5):
    """x_nchw: (N, Cin, H, W) f32.  weight: (Cout, Cin) = squeezed 1x1 conv weight.
    alpha: scalar or (Cout,) PReLU slope.  Returns (N, Cout, H, W) f32."""
    N, Cin, H, W = x_nchw.shape
    Cout = weight.shape[0]
    HW = H * W

    # ---- fold BatchNorm (inference) into the conv weight + a per-channel shift ----
    scale = (gamma / jnp.sqrt(running_var + eps)).astype(jnp.float32)       # (Cout,)
    shift = (beta - running_mean * scale).astype(jnp.float32)               # (Cout,)
    w_scaled = weight.astype(jnp.float32) * scale[:, None]                  # (Cout, Cin)

    # PReLU slope: accept scalar (nn.PReLU()) or per-channel vector.
    alpha_arr = jnp.asarray(alpha, jnp.float32).reshape(-1)
    if alpha_arr.shape[0] == 1:
        alpha_arr = jnp.broadcast_to(alpha_arr, (Cout,))
    params = jnp.stack([shift.reshape(Cout, 1),
                        alpha_arr.reshape(Cout, 1)])                        # (2, Cout, 1)

    # ---- generation-aware VMEM budget & tile sizing ----
    try:
        vmem_cap = int(getattr(pltpu.get_tpu_info(), "vmem_capacity_bytes", 64 << 20))
    except Exception:
        vmem_cap = 64 << 20
    vmem_limit = max(32 << 20, int(0.75 * vmem_cap))   # 48 MiB on v7x, 96 MiB on v5e/v6e
    tile_budget = vmem_limit // 2                      # room for double-buffered in+out tiles

    bytes_per_lane = 4 * (Cin + Cout)                  # f32 HBM bytes / spatial pos / sample
    target_step_bytes = 4 << 20                        # ~4 MiB HBM traffic per grid step
    max_lanes = max(128, tile_budget // (2 * bytes_per_lane))   # VMEM-derived lane cap
    lanes_target = max(128, target_step_bytes // bytes_per_lane)
    lane_cap = min(max_lanes, lanes_target)

    x_flat = x_nchw.reshape(N, Cin, HW).astype(jnp.float32)

    if HW <= lane_cap:
        # Small spatial: whole H*W per step (full-extent block, no 128 requirement, no pad);
        # batch-block samples to amortize the per-step overhead.
        thw = HW
        n_sp = 1
        HW_pad = HW
        bn = 1
        for d in range(1, N + 1):
            if N % d == 0 and d * HW <= lane_cap:
                bn = d
        # keep >= 2 batch steps for megacore when there is non-trivial work to split
        if bn == N and N >= 2 and N * HW * bytes_per_lane > (8 << 20):
            bn = max(d for d in range(1, N) if N % d == 0)
    else:
        # Large spatial: prefer the largest 128-multiple divisor of HW (no pad/slice);
        # fall back to padding only if HW factors badly.
        bn = 1
        thw_cap = max(128, (lane_cap // 128) * 128)
        thw = 0
        if HW % 128 == 0:
            for cand in range(min(thw_cap, HW), 127, -128):
                if HW % cand == 0:
                    thw = cand
                    break
        if thw < max(128, thw_cap // 4):
            thw = min(thw_cap, ((HW + 127) // 128) * 128)   # padding fallback
        n_sp = (HW + thw - 1) // thw
        HW_pad = n_sp * thw
        if HW_pad != HW:
            x_flat = jnp.pad(x_flat, ((0, 0), (0, 0), (0, HW_pad - HW)))

    grid = (N // bn, n_sp)

    out = pl.pallas_call(
        _conv_bn_prelu_kernel,
        out_shape=jax.ShapeDtypeStruct((N, Cout, HW_pad), jnp.float32),
        grid_spec=pltpu.PrefetchScalarGridSpec(
            num_scalar_prefetch=0,
            grid=grid,
            in_specs=[
                pl.BlockSpec((bn, Cin, thw), lambda n, s: (n, 0, s)),
                pl.BlockSpec((Cout, Cin), lambda n, s: (0, 0)),
                pl.BlockSpec((2, Cout, 1), lambda n, s: (0, 0, 0)),
            ],
            out_specs=pl.BlockSpec((bn, Cout, thw), lambda n, s: (n, 0, s)),
        ),
        compiler_params=pltpu.CompilerParams(
            dimension_semantics=("parallel", "parallel"),
            vmem_limit_bytes=int(vmem_limit),
        ),
    )(x_flat, w_scaled, params)

    if HW_pad != HW:
        out = out[:, :, :HW]
    return out.reshape(N, Cout, H, W)


if __name__ == "__main__":
    # Small synthetic shapes consistent with the module (kernel_size=1 default).
    N, Cin, H, W = 2, 4, 16, 16
    Cout = 8

    key = jax.random.PRNGKey(0)
    kx, kw, kg, kb, km, kv = jax.random.split(key, 6)

    x = jax.random.normal(kx, (N, Cin, H, W), dtype=jnp.float32)

    # conv.weight: (Cout, Cin, 1, 1) squeezed to (Cout, Cin), bias=False
    weight = 0.1 * jax.random.normal(kw, (Cout, Cin), dtype=jnp.float32)
    # BatchNorm2d(out_channels): weight, bias, running_mean, running_var
    gamma = 1.0 + 0.1 * jax.random.normal(kg, (Cout,), dtype=jnp.float32)
    beta = 0.1 * jax.random.normal(kb, (Cout,), dtype=jnp.float32)
    running_mean = 0.1 * jax.random.normal(km, (Cout,), dtype=jnp.float32)
    running_var = 1.0 + 0.1 * jax.random.uniform(kv, (Cout,), dtype=jnp.float32)
    # PReLU(): single shared slope, default init 0.25
    alpha = jnp.float32(0.25)

    out = conv_prelu(x, weight, gamma, beta, running_mean, running_var, alpha)
    out = jax.block_until_ready(out)

    # Pure-JAX reference (same math, no Pallas).
    scale = gamma / jnp.sqrt(running_var + 1e-5)
    shift = beta - running_mean * scale
    y_ref = jnp.einsum("nchw,oc->nohw", x, weight)
    y_ref = y_ref * scale[None, :, None, None] + shift[None, :, None, None]
    y_ref = jnp.where(y_ref > 0, y_ref, alpha * y_ref)
    assert out.shape == (N, Cout, H, W)
    assert jnp.allclose(out, y_ref, atol=1e-4, rtol=1e-4)

    print("KERNEL_OK")
</pallas_src>

<mosaic_0001>
module attributes {stable_mosaic.version = 11 : i64} {
  func.func @_conv_bn_prelu_kernel(%arg0: i32, %arg1: i32, %arg2: memref<2x4x256xf32, #tpu.memory_space<vmem>>, %arg3: memref<8x4xf32, #tpu.memory_space<vmem>>, %arg4: memref<2x8x1xf32, #tpu.memory_space<vmem>>, %arg5: memref<2x8x256xf32, #tpu.memory_space<vmem>>) attributes {dimension_semantics = [#tpu.dimension_semantics<parallel>, #tpu.dimension_semantics<parallel>], iteration_bounds = array<i64: 1, 1>, scalar_prefetch = 0 : i64, scratch_operands = 0 : i64, tpu.core_type = #tpu.core_type<tc>, window_params = [{transform_indices = @transform_0, window_bounds = array<i64: 2, 4, 256>}, {pipeline_mode = #tpu.pipeline_mode<synchronous>, transform_indices = @transform_1, window_bounds = array<i64: 8, 4>}, {pipeline_mode = #tpu.pipeline_mode<synchronous>, transform_indices = @transform_2, window_bounds = array<i64: 2, 8, 1>}, {transform_indices = @transform_3, window_bounds = array<i64: 2, 8, 256>}]} {
    %c0 = arith.constant 0 : index
    %c0_0 = arith.constant 0 : index
    %0 = vector.load %arg3[%c0, %c0_0] : memref<8x4xf32, #tpu.memory_space<vmem>>, vector<8x4xf32>
    %c0_1 = arith.constant 0 : index
    %c0_2 = arith.constant 0 : index
    %c0_3 = arith.constant 0 : index
    %1 = vector.load %arg4[%c0_1, %c0_2, %c0_3] : memref<2x8x1xf32, #tpu.memory_space<vmem>>, vector<1x8x1xf32>
    %2 = vector.shape_cast %1 : vector<1x8x1xf32> to vector<8x1xf32>
    %c1 = arith.constant 1 : index
    %c0_4 = arith.constant 0 : index
    %c0_5 = arith.constant 0 : index
    %3 = vector.load %arg4[%c1, %c0_4, %c0_5] : memref<2x8x1xf32, #tpu.memory_space<vmem>>, vector<1x8x1xf32>
    %4 = vector.shape_cast %3 : vector<1x8x1xf32> to vector<8x1xf32>
    %c0_6 = arith.constant 0 : index
    %c0_7 = arith.constant 0 : index
    %c0_8 = arith.constant 0 : index
    %5 = vector.load %arg2[%c0_6, %c0_7, %c0_8] : memref<2x4x256xf32, #tpu.memory_space<vmem>>, vector<1x4x256xf32>
    %6 = vector.shape_cast %5 : vector<1x4x256xf32> to vector<4x256xf32>
    %7 = vector.extract_strided_slice %0 {offsets = [0, 0], sizes = [8, 1], strides = [1, 1]} : vector<8x4xf32> to vector<8x1xf32>
    %8 = vector.extract_strided_slice %6 {offsets = [0, 0], sizes = [1, 256], strides = [1, 1]} : vector<4x256xf32> to vector<1x256xf32>
    %9 = vector.broadcast %7 : vector<8x1xf32> to vector<8x256xf32>
    %10 = vector.broadcast %8 : vector<1x256xf32> to vector<8x256xf32>
    %11 = arith.mulf %9, %10 : vector<8x256xf32>
    %12 = vector.extract_strided_slice %0 {offsets = [0, 1], sizes = [8, 1], strides = [1, 1]} : vector<8x4xf32> to vector<8x1xf32>
    %13 = vector.extract_strided_slice %6 {offsets = [1, 0], sizes = [1, 256], strides = [1, 1]} : vector<4x256xf32> to vector<1x256xf32>
    %14 = vector.broadcast %12 : vector<8x1xf32> to vector<8x256xf32>
    %15 = vector.broadcast %13 : vector<1x256xf32> to vector<8x256xf32>
    %16 = arith.mulf %14, %15 : vector<8x256xf32>
    %17 = arith.addf %11, %16 : vector<8x256xf32>
    %18 = vector.extract_strided_slice %0 {offsets = [0, 2], sizes = [8, 1], strides = [1, 1]} : vector<8x4xf32> to vector<8x1xf32>
    %19 = vector.extract_strided_slice %6 {offsets = [2, 0], sizes = [1, 256], strides = [1, 1]} : vector<4x256xf32> to vector<1x256xf32>
    %20 = vector.broadcast %18 : vector<8x1xf32> to vector<8x256xf32>
    %21 = vector.broadcast %19 : vector<1x256xf32> to vector<8x256xf32>
    %22 = arith.mulf %20, %21 : vector<8x256xf32>
    %23 = arith.addf %17, %22 : vector<8x256xf32>
    %24 = vector.extract_strided_slice %0 {offsets = [0, 3], sizes = [8, 1], strides = [1, 1]} : vector<8x4xf32> to vector<8x1xf32>
    %25 = vector.extract_strided_slice %6 {offsets = [3, 0], sizes = [1, 256], strides = [1, 1]} : vector<4x256xf32> to vector<1x256xf32>
    %26 = vector.broadcast %24 : vector<8x1xf32> to vector<8x256xf32>
    %27 = vector.broadcast %25 : vector<1x256xf32> to vector<8x256xf32>
    %28 = arith.mulf %26, %27 : vector<8x256xf32>
    %29 = arith.addf %23, %28 : vector<8x256xf32>
    %30 = vector.broadcast %2 : vector<8x1xf32> to vector<8x256xf32>
    %31 = arith.addf %29, %30 : vector<8x256xf32>
    %cst = arith.constant 0.000000e+00 : f32
    %32 = vector.broadcast %cst : f32 to vector<8x256xf32>
    %33 = arith.cmpf ogt, %31, %32 : vector<8x256xf32>
    %34 = vector.broadcast %4 : vector<8x1xf32> to vector<8x256xf32>
    %35 = arith.mulf %34, %31 : vector<8x256xf32>
    %36 = arith.select %33, %31, %35 : vector<8x256xi1>, vector<8x256xf32>
    %c0_9 = arith.constant 0 : index
    %c0_10 = arith.constant 0 : index
    %c0_11 = arith.constant 0 : index
    %37 = vector.load %arg5[%c0_9, %c0_10, %c0_11] : memref<2x8x256xf32, #tpu.memory_space<vmem>>, vector<1x8x256xf32>
    %38 = vector.shape_cast %37 : vector<1x8x256xf32> to vector<8x256xf32>
    %39 = vector.shape_cast %36 : vector<8x256xf32> to vector<1x8x256xf32>
    tpu.vector_store %arg5[%c0_9, %c0_10, %c0_11], %39 {strides = array<i32>} : memref<2x8x256xf32, #tpu.memory_space<vmem>>, vector<1x8x256xf32>,
    %c1_12 = arith.constant 1 : index
    %c0_13 = arith.constant 0 : index
    %c0_14 = arith.constant 0 : index
    %40 = vector.load %arg2[%c1_12, %c0_13, %c0_14] : memref<2x4x256xf32, #tpu.memory_space<vmem>>, vector<1x4x256xf32>
    %41 = vector.shape_cast %40 : vector<1x4x256xf32> to vector<4x256xf32>
    %42 = vector.extract_strided_slice %0 {offsets = [0, 0], sizes = [8, 1], strides = [1, 1]} : vector<8x4xf32> to vector<8x1xf32>
    %43 = vector.extract_strided_slice %41 {offsets = [0, 0], sizes = [1, 256], strides = [1, 1]} : vector<4x256xf32> to vector<1x256xf32>
    %44 = vector.broadcast %42 : vector<8x1xf32> to vector<8x256xf32>
    %45 = vector.broadcast %43 : vector<1x256xf32> to vector<8x256xf32>
    %46 = arith.mulf %44, %45 : vector<8x256xf32>
    %47 = vector.extract_strided_slice %0 {offsets = [0, 1], sizes = [8, 1], strides = [1, 1]} : vector<8x4xf32> to vector<8x1xf32>
    %48 = vector.extract_strided_slice %41 {offsets = [1, 0], sizes = [1, 256], strides = [1, 1]} : vector<4x256xf32> to vector<1x256xf32>
    %49 = vector.broadcast %47 : vector<8x1xf32> to vector<8x256xf32>
    %50 = vector.broadcast %48 : vector<1x256xf32> to vector<8x256xf32>
    %51 = arith.mulf %49, %50 : vector<8x256xf32>
    %52 = arith.addf %46, %51 : vector<8x256xf32>
    %53 = vector.extract_strided_slice %0 {offsets = [0, 2], sizes = [8, 1], strides = [1, 1]} : vector<8x4xf32> to vector<8x1xf32>
    %54 = vector.extract_strided_slice %41 {offsets = [2, 0], sizes = [1, 256], strides = [1, 1]} : vector<4x256xf32> to vector<1x256xf32>
    %55 = vector.broadcast %53 : vector<8x1xf32> to vector<8x256xf32>
    %56 = vector.broadcast %54 : vector<1x256xf32> to vector<8x256xf32>
    %57 = arith.mulf %55, %56 : vector<8x256xf32>
    %58 = arith.addf %52, %57 : vector<8x256xf32>
    %59 = vector.extract_strided_slice %0 {offsets = [0, 3], sizes = [8, 1], strides = [1, 1]} : vector<8x4xf32> to vector<8x1xf32>
    %60 = vector.extract_strided_slice %41 {offsets = [3, 0], sizes = [1, 256], strides = [1, 1]} : vector<4x256xf32> to vector<1x256xf32>
    %61 = vector.broadcast %59 : vector<8x1xf32> to vector<8x256xf32>
    %62 = vector.broadcast %60 : vector<1x256xf32> to vector<8x256xf32>
    %63 = arith.mulf %61, %62 : vector<8x256xf32>
    %64 = arith.addf %58, %63 : vector<8x256xf32>
    %65 = vector.broadcast %2 : vector<8x1xf32> to vector<8x256xf32>
    %66 = arith.addf %64, %65 : vector<8x256xf32>
    %cst_15 = arith.constant 0.000000e+00 : f32
    %67 = vector.broadcast %cst_15 : f32 to vector<8x256xf32>
    %68 = arith.cmpf ogt, %66, %67 : vector<8x256xf32>
    %69 = vector.broadcast %4 : vector<8x1xf32> to vector<8x256xf32>
    %70 = arith.mulf %69, %66 : vector<8x256xf32>
    %71 = arith.select %68, %66, %70 : vector<8x256xi1>, vector<8x256xf32>
    %c1_16 = arith.constant 1 : index
    %c0_17 = arith.constant 0 : index
    %c0_18 = arith.constant 0 : index
    %72 = vector.load %arg5[%c1_16, %c0_17, %c0_18] : memref<2x8x256xf32, #tpu.memory_space<vmem>>, vector<1x8x256xf32>
    %73 = vector.shape_cast %72 : vector<1x8x256xf32> to vector<8x256xf32>
    %74 = vector.shape_cast %71 : vector<8x256xf32> to vector<1x8x256xf32>
    tpu.vector_store %arg5[%c1_16, %c0_17, %c0_18], %74 {strides = array<i32>} : memref<2x8x256xf32, #tpu.memory_space<vmem>>, vector<1x8x256xf32>,
    return
  }
  func.func @transform_0(%arg0: i32, %arg1: i32) -> (i32, i32, i32) {
    %c0_i32 = arith.constant 0 : i32
    %c0_i32_0 = arith.constant 0 : i32
    return %arg0, %c0_i32, %arg1 : i32, i32, i32
  }
  func.func @transform_1(%arg0: i32, %arg1: i32) -> (i32, i32) {
    %c0_i32 = arith.constant 0 : i32
    %c0_i32_0 = arith.constant 0 : i32
    %c0_i32_1 = arith.constant 0 : i32
    return %c0_i32, %c0_i32_0 : i32, i32
  }
  func.func @transform_2(%arg0: i32, %arg1: i32) -> (i32, i32, i32) {
    %c0_i32 = arith.constant 0 : i32
    %c0_i32_0 = arith.constant 0 : i32
    %c0_i32_1 = arith.constant 0 : i32
    %c0_i32_2 = arith.constant 0 : i32
    return %c0_i32, %c0_i32_0, %c0_i32_1 : i32, i32, i32
  }
  func.func @transform_3(%arg0: i32, %arg1: i32) -> (i32, i32, i32) {
    %c0_i32 = arith.constant 0 : i32
    %c0_i32_0 = arith.constant 0 : i32
    return %arg0, %c0_i32, %arg1 : i32, i32, i32
  }
}

</mosaic_0001>

<llo_original>
// kernel: tpu_custom_call.1
$region0: #{tpu_custom_call.1}
  #allocation0 [shape = 'u32[]', space=smem, size = 0x4, offset = 0x4, fixed_abs, tag = 'smem constant byte address 0x4 - core index']
  #allocation1 [shape = 'u32[72,128]{1,0:T(1,128)}', space=vmem, size = 0x9000, scoped, tag = 'internal scratch']
  %s0 = inlined_call_operand.vmem [shape: f32[2,4,256], index: 0, kind: input, shape index: {}]
  %s1 = inlined_call_operand.vmem [shape: f32[8,4], index: 1, kind: input, shape index: {}]
  %s2 = inlined_call_operand.vmem [shape: f32[2,8,1], index: 2, kind: input, shape index: {}]
  %s3 = inlined_call_operand.hbm [shape: f32[2,8,256], index: 3, kind: output, shape index: {}]
  %s4 = sld [smem:[#allocation0]]
  $region22: #{tpu_custom_call.1} parent=0
    _
  %s6 = ssub.s32 1, %s4
  %s7 = scalar_select 0, %s6, %s4
  $region1: #{tpu_custom_call.1} parent=0
    #allocation2 [shape = 'u8[16384]{0}', space=vmem, size = 0x4000, scoped, tag = 'output window, operand 0, single buffered']
    #allocation3 [shape = 's32[1]{0}', space=sflag, size = 0x4, scoped, tag = 'scoped memory for tpu_custom_call.1']
    %8 = vsyncpa [#allocation3], 0
    // Predicated region
    $region2: #{tpu_custom_call.1} parent=1 // pred_check
      _
    $region3: #{tpu_custom_call.1} parent=1 // pred_check_branch
      %10 = sbr.rel (0) target = $region5
    $region4: #{tpu_custom_call.1} parent=1 // pred_region
      _
    $region5: #{tpu_custom_call.1} parent=1 // pred_fallthru
      _
    // Predicated region
    $region6: #{tpu_custom_call.1} parent=1 // pred_check
      _
    $region7: #{tpu_custom_call.1} parent=1 // pred_check_branch
      %12 = sbr.rel (0) target = $region9
    $region8: #{tpu_custom_call.1} parent=1 // pred_region
      _
    $region9: #{tpu_custom_call.1} parent=1 // pred_fallthru
      _
    // Predicated region
    $region10: #{tpu_custom_call.1} parent=1 // pred_check
      _
    $region11: #{tpu_custom_call.1} parent=1 // pred_check_branch
      %14 = sbr.rel (0) target = $region13
    $region12: #{tpu_custom_call.1} parent=1 // pred_region
      _
    $region13: #{tpu_custom_call.1} parent=1 // pred_fallthru
      _
    %v15 = vld [vmem:[%s1] sm:$0xff]
    %v16 = vld [vmem:[%s2] sm:$0xff]
    %s17 = scalar_lea.vmem %s2, 8
    %v18 = vld [vmem:[%s17] sm:$0xff]
    %v19 = vld [vmem:[%s0] sm:$0xff]
    %21 = vset.pattern.permute.xlu0 0
    %22 = vperm.xlu0 %21, %v15
    %v23 = vpop.permute.xlu0 %22
    %v26 = vperm.slane %v19, 0
    %v27 = vperm.slane %v19, 4
    %v30 = vperm.slane %v26, 0
    %v31 = vperm.slane %v27, 0
    %v32 = vmul.f32 %v23, %v30
    %v33 = vmul.f32 %v23, %v31
    %34 = vset.pattern.permute.xlu0 1
    %35 = vperm.xlu0 %34, %v15
    %v36 = vpop.permute.xlu0 %35
    %v38 = vperm.slane %v19, 1
    %v39 = vperm.slane %v19, 5
    %v42 = vperm.slane %v38, 1
    %v43 = vperm.slane %v39, 1
    %v44 = vmul.f32 %v36, %v42
    %v45 = vmul.f32 %v36, %v43
    %v46 = vadd.f32 %v32, %v44
    %v47 = vadd.f32 %v33, %v45
    %48 = vset.pattern.permute.xlu0 2
    %49 = vperm.xlu0 %48, %v15
    %v50 = vpop.permute.xlu0 %49
    %v52 = vperm.slane %v19, 2
    %v53 = vperm.slane %v19, 6
    %v56 = vperm.slane %v52, 2
    %v57 = vperm.slane %v53, 2
    %v58 = vmul.f32 %v50, %v56
    %v59 = vmul.f32 %v50, %v57
    %v60 = vadd.f32 %v46, %v58
    %v61 = vadd.f32 %v47, %v59
    %62 = vset.pattern.permute.xlu0 3
    %63 = vperm.xlu0 %62, %v15
    %v64 = vpop.permute.xlu0 %63
    %v66 = vperm.slane %v19, 3
    %v67 = vperm.slane %v19, 7
    %v70 = vperm.slane %v66, 3
    %v71 = vperm.slane %v67, 3
    %v72 = vmul.f32 %v64, %v70
    %v73 = vmul.f32 %v64, %v71
    %v74 = vadd.f32 %v60, %v72
    %v75 = vadd.f32 %v61, %v73
    %77 = vset.pattern.permute.xlu0 0
    %78 = vperm.xlu0 %77, %v16
    %v79 = vpop.permute.xlu0 %78
    %v81 = vadd.f32 %v74, %v79
    %v82 = vadd.f32 %v75, %v79
    %vm83 = vcmp.gt.f32.partialorder %v81, 0.0
    %vm84 = vcmp.gt.f32.partialorder %v82, 0.0
    %86 = vset.pattern.permute.xlu0 0
    %87 = vperm.xlu0 %86, %v18
    %v88 = vpop.permute.xlu0 %87
    %v90 = vmul.f32 %v88, %v81
    %v91 = vmul.f32 %v88, %v82
    %v92 = vsel %vm83, %v81, %v90
    %v93 = vsel %vm84, %v82, %v91
    %94 = vst [vmem:[#allocation2] sm:$0xff] %v92
    %95 = vst [vmem:[#allocation2 + $0x8] sm:$0xff] %v93
    %s96 = scalar_lea.vmem %s0, 8
    %v97 = vld [vmem:[%s96] sm:$0xff]
    %v99 = vperm.slane %v97, 0
    %v100 = vperm.slane %v97, 4
    %v103 = vperm.slane %v99, 0
    %v104 = vperm.slane %v100, 0
    %v105 = vmul.f32 %v23, %v103
    %v106 = vmul.f32 %v23, %v104
    %v107 = vperm.slane %v97, 1
    %v108 = vperm.slane %v97, 5
    %v111 = vperm.slane %v107, 1
    %v112 = vperm.slane %v108, 1
    %v113 = vmul.f32 %v36, %v111
    %v114 = vmul.f32 %v36, %v112
    %v115 = vadd.f32 %v105, %v113
    %v116 = vadd.f32 %v106, %v114
    %v117 = vperm.slane %v97, 2
    %v118 = vperm.slane %v97, 6
    %v121 = vperm.slane %v117, 2
    %v122 = vperm.slane %v118, 2
    %v123 = vmul.f32 %v50, %v121
    %v124 = vmul.f32 %v50, %v122
    %v125 = vadd.f32 %v115, %v123
    %v126 = vadd.f32 %v116, %v124
    %v127 = vperm.slane %v97, 3
    %v128 = vperm.slane %v97, 7
    %v131 = vperm.slane %v127, 3
    %v132 = vperm.slane %v128, 3
    %v133 = vmul.f32 %v64, %v131
    %v134 = vmul.f32 %v64, %v132
    %v135 = vadd.f32 %v125, %v133
    %v136 = vadd.f32 %v126, %v134
    %v137 = vadd.f32 %v135, %v79
    %v138 = vadd.f32 %v136, %v79
    %vm139 = vcmp.gt.f32.partialorder %v137, 0.0
    %vm140 = vcmp.gt.f32.partialorder %v138, 0.0
    %v141 = vmul.f32 %v88, %v137
    %v142 = vmul.f32 %v88, %v138
    %v143 = vsel %vm139, %v137, %v141
    %v144 = vsel %vm140, %v138, %v142
    %s145 = scalar_lea.vmem [#allocation2], 16
    %146 = vst [vmem:[%s145] sm:$0xff] %v143
    %147 = vst [vmem:[%s145 + $0x8] sm:$0xff] %v144
    // Predicated region
    $region14: #{tpu_custom_call.1} parent=1 // pred_check
      _
    $region15: #{tpu_custom_call.1} parent=1 // pred_check_branch
      %149 = sbr.rel (0) target = $region17
    $region16: #{tpu_custom_call.1} parent=1 // pred_region
      %151 = vsyncadd [#allocation3], 0
      %s152 = sshll.u32 [#allocation2], 4
      %s153 = int_to_ptr.vmem [resolvable:$true] %s152
      %s154 = sshll.u32 %s3, 4
      %s155 = int_to_ptr.hbm [resolvable:$true] %s154
      %160 = dma.vmem_to_hbm [thread:$0]  %s153, 512, %s155, [#allocation3], 256, 256, 16
    $region17: #{tpu_custom_call.1} parent=1 // pred_fallthru
      _
    // Predicated region
    $region18: #{tpu_custom_call.1} parent=1 // pred_check
      _
    $region19: #{tpu_custom_call.1} parent=1 // pred_check_branch
      %162 = sbr.rel (0) target = $region21
    $region20: #{tpu_custom_call.1} parent=1 // pred_region
      %164 = dma.done [#allocation3], 512
    $region21: #{tpu_custom_call.1} parent=1 // pred_fallthru
      _
    %165 = vsyncpa [#allocation3], 1

</llo_original>
